<compile_context>
chip_gen: v7x
topology: tpu7x:2x2x1
jax: 0.10.0
libtpu: 0.0.40
codegen_flags: <defaults>
</compile_context>

<pallas_src>
import functools

import jax
import jax.numpy as jnp
from jax.experimental import pallas as pl
from jax.experimental.pallas import tpu as pltpu


# ------------------------------ helpers -------------------------------------


def _round_up(x, m):
    return ((x + m - 1) // m) * m


def _pick_lane_tile(dim, cap):
    """Tile for a lane-dim (last-dim) axis: multiple of 128, <= cap."""
    cap = max(128, (cap // 128) * 128)
    return min(cap, _round_up(dim, 128))


def _pick_tm(m, cap):
    """Tile for the M (sublane) axis: multiple of 8, <= cap, low pad waste."""
    cap = max(8, (cap // 8) * 8)
    m8 = _round_up(m, 8)
    if m8 <= cap:
        return m8                      # single M block, zero extra waste
    best_t, best_eff = 8, 0.0
    c = cap
    while True:
        eff = m / _round_up(m, c)
        if eff >= 0.88:                # big tile with little padded work
            return c
        if eff > best_eff:
            best_t, best_eff = c, eff
        if c == 8:
            break
        c = max(8, ((c // 2) // 8) * 8)
    return best_t


# ------------------------------ kernels -------------------------------------


def _matmul_bias_kernel(x_ref, w_ref, b_ref, o_ref, acc_ref):
    """One (tm, tn) output tile; grid axis 2 is the K reduction."""
    k = pl.program_id(2)

    @pl.when(k == 0)
    def _():
        acc_ref[...] = jnp.zeros_like(acc_ref)

    acc_ref[...] += jnp.dot(x_ref[...], w_ref[...],
                            preferred_element_type=jnp.float32)

    @pl.when(k == pl.num_programs(2) - 1)
    def _():
        o_ref[...] = (acc_ref[...] + b_ref[...].astype(jnp.float32)
                      ).astype(o_ref.dtype)


def _matmul_bias_prior_kernel(x_ref, px_ref, w_ref, pw_ref, b_ref, pb_ref,
                              o_ref, acc_ref, *, s_post, s_prior):
    """Fused base+prior tile: acc += s_post*x@W + s_prior*px@Wp (two MXU streams)."""
    k = pl.program_id(2)

    @pl.when(k == 0)
    def _():
        acc_ref[...] = jnp.zeros_like(acc_ref)

    acc_ref[...] += s_post * jnp.dot(x_ref[...], w_ref[...],
                                     preferred_element_type=jnp.float32)
    acc_ref[...] += s_prior * jnp.dot(px_ref[...], pw_ref[...],
                                      preferred_element_type=jnp.float32)

    @pl.when(k == pl.num_programs(2) - 1)
    def _():
        o_ref[...] = (acc_ref[...]
                      + s_post * b_ref[...].astype(jnp.float32)
                      + s_prior * pb_ref[...].astype(jnp.float32)
                      ).astype(o_ref.dtype)


def _small_linear_kernel(x_ref, w_ref, b_ref, o_ref):
    o_ref[...] = (jnp.dot(x_ref[...], w_ref[...],
                          preferred_element_type=jnp.float32)
                  + b_ref[...].astype(jnp.float32)).astype(o_ref.dtype)


def _small_linear_prior_kernel(x_ref, px_ref, w_ref, pw_ref, b_ref, pb_ref,
                               o_ref, *, s_post, s_prior):
    acc = s_post * (jnp.dot(x_ref[...], w_ref[...],
                            preferred_element_type=jnp.float32)
                    + b_ref[...].astype(jnp.float32))
    acc = acc + s_prior * (jnp.dot(px_ref[...], pw_ref[...],
                                   preferred_element_type=jnp.float32)
                           + pb_ref[...].astype(jnp.float32))
    o_ref[...] = acc.astype(o_ref.dtype)


# ------------------------------ wrappers ------------------------------------


def pallas_linear_small(x, w, b, *, x_prior=None, w_prior=None, b_prior=None,
                        s_post=1.0, s_prior=1.0, out_dtype=None):
    """Single-block (no grid) linear for small shapes; no padding needed."""
    M, _ = x.shape
    N = w.shape[1]
    out_dtype = out_dtype if out_dtype is not None else x.dtype
    b = b.reshape(1, -1)
    if x_prior is None:
        return pl.pallas_call(
            _small_linear_kernel,
            out_shape=jax.ShapeDtypeStruct((M, N), out_dtype),
        )(x, w, b)
    b_prior = b_prior.reshape(1, -1)
    kern = functools.partial(_small_linear_prior_kernel,
                             s_post=float(s_post), s_prior=float(s_prior))
    return pl.pallas_call(
        kern,
        out_shape=jax.ShapeDtypeStruct((M, N), out_dtype),
    )(x, x_prior, w, w_prior, b, b_prior)


def pallas_linear_tiled(x, w, b, *, x_prior=None, w_prior=None, b_prior=None,
                        s_post=1.0, s_prior=1.0, out_dtype=None,
                        tm_max=512, tn_max=256, tk_max=1024):
    """Tiled y = x @ w + b (optionally fused with a scaled prior linear).

    `x` may have fewer K columns than `w` has rows; the extra weight rows must
    be zero padding (the module pre-pads weights once at init, so only the
    activations are padded per call, and only when the shapes are ragged).
    """
    has_prior = x_prior is not None
    M, Kx = x.shape
    Kw, N = w.shape
    assert Kx <= Kw, (Kx, Kw)
    if has_prior:
        assert x_prior.shape == x.shape
        assert w_prior.shape == w.shape
    out_dtype = out_dtype if out_dtype is not None else x.dtype
    b = b.reshape(1, -1)
    if has_prior:
        b_prior = b_prior.reshape(1, -1)

    tm = _pick_tm(M, tm_max)
    tn = _pick_lane_tile(N, tn_max)
    tk = _pick_lane_tile(Kw, tk_max)
    Mp, Np, Kp = _round_up(M, tm), _round_up(N, tn), _round_up(Kw, tk)

    # Activation padding (per call, usually a no-op for matmul-friendly shapes).
    if (Mp, Kp) != (M, Kx):
        x = jnp.pad(x, ((0, Mp - M), (0, Kp - Kx)))
        if has_prior:
            x_prior = jnp.pad(x_prior, ((0, Mp - M), (0, Kp - Kx)))
    # Weight/bias padding (no-op when the caller pre-padded, e.g. LinearPallas).
    if (Kp, Np) != (Kw, N):
        w = jnp.pad(w, ((0, Kp - Kw), (0, Np - N)))
        if has_prior:
            w_prior = jnp.pad(w_prior, ((0, Kp - Kw), (0, Np - N)))
    if Np != b.shape[1]:
        b = jnp.pad(b, ((0, 0), (0, Np - b.shape[1])))
        if has_prior:
            b_prior = jnp.pad(b_prior, ((0, 0), (0, Np - b_prior.shape[1])))

    grid = (Mp // tm, Np // tn, Kp // tk)

    in_bytes = jnp.dtype(x.dtype).itemsize
    out_bytes = jnp.dtype(out_dtype).itemsize
    n_streams = 2 if has_prior else 1
    # Double-buffered inputs + double-buffered output + f32 accumulator.
    vmem_need = (2 * n_streams * (tm * tk + tk * tn + tn) * in_bytes
                 + 2 * tm * tn * out_bytes + tm * tn * 4)
    vmem_limit = int(max(vmem_need + (4 << 20), 32 << 20))

    cost = pl.CostEstimate(
        flops=2 * M * N * Kx * n_streams,
        transcendentals=0,
        bytes_accessed=n_streams * (M * Kx + Kw * N) * in_bytes + M * N * out_bytes,
    )

    x_spec = pl.BlockSpec((tm, tk), lambda i, j, k: (i, k))
    w_spec = pl.BlockSpec((tk, tn), lambda i, j, k: (k, j))
    b_spec = pl.BlockSpec((1, tn), lambda i, j, k: (0, j))
    o_spec = pl.BlockSpec((tm, tn), lambda i, j, k: (i, j))

    cparams = pltpu.CompilerParams(
        dimension_semantics=("parallel", "parallel", "arbitrary"),
        vmem_limit_bytes=vmem_limit,
    )

    if not has_prior:
        out = pl.pallas_call(
            _matmul_bias_kernel,
            out_shape=jax.ShapeDtypeStruct((Mp, Np), out_dtype),
            grid_spec=pltpu.PrefetchScalarGridSpec(
                num_scalar_prefetch=0,
                grid=grid,
                in_specs=[x_spec, w_spec, b_spec],
                out_specs=o_spec,
                scratch_shapes=[pltpu.VMEM((tm, tn), jnp.float32)],
            ),
            compiler_params=cparams,
            cost_estimate=cost,
        )(x, w, b)
    else:
        kern = functools.partial(_matmul_bias_prior_kernel,
                                 s_post=float(s_post), s_prior=float(s_prior))
        out = pl.pallas_call(
            kern,
            out_shape=jax.ShapeDtypeStruct((Mp, Np), out_dtype),
            grid_spec=pltpu.PrefetchScalarGridSpec(
                num_scalar_prefetch=0,
                grid=grid,
                in_specs=[x_spec, x_spec, w_spec, w_spec, b_spec, b_spec],
                out_specs=o_spec,
                scratch_shapes=[pltpu.VMEM((tm, tn), jnp.float32)],
            ),
            compiler_params=cparams,
            cost_estimate=cost,
        )(x, x_prior, w, w_prior, b, b_prior)

    if (Mp, Np) != (M, N):
        out = out[:M, :N]
    return out


# ------------------------------ module --------------------------------------


class LinearPallas:
    """JAX/Pallas port of the PyTorch `Linear` module (base + optional prior)."""

    def __init__(self, in_features, out_features, key,
                 prior_std=0.0, prior_scale=1.0, posterior_scale=1.0,
                 param_dtype=jnp.float32,
                 tm_max=512, tn_max=256, tk_max=1024,
                 small_path_bytes=8 << 20):
        self.in_features = in_features
        self.out_features = out_features
        self.prior_std = prior_std
        self.prior_scale = float(prior_scale)
        self.posterior_scale = float(posterior_scale)
        self.param_dtype = jnp.dtype(param_dtype)
        self.tm_max, self.tn_max, self.tk_max = tm_max, tn_max, tk_max
        self.small_path_bytes = small_path_bytes

        k1, k2, k3, k4 = jax.random.split(key, 4)
        bound = 1.0 / (in_features ** 0.5)     # PyTorch nn.Linear default init
        # stored as [In, Out] (transpose of torch's [Out, In])
        self.w = jax.random.uniform(k1, (in_features, out_features),
                                    jnp.float32, -bound, bound).astype(self.param_dtype)
        self.b = jax.random.uniform(k2, (1, out_features),
                                    jnp.float32, -bound, bound).astype(self.param_dtype)

        # Tile plan depends only on (K, N) -> pad weights ONCE at init so the
        # per-call wrapper never re-pads them.
        tn = _pick_lane_tile(out_features, tn_max)
        tk = _pick_lane_tile(in_features, tk_max)
        self._Np = _round_up(out_features, tn)
        self._Kp = _round_up(in_features, tk)
        self.w_pad = self._pad_w(self.w)
        self.b_pad = self._pad_b(self.b)

        if prior_std:
            self.pw = jax.random.uniform(k3, (in_features, out_features),
                                         jnp.float32, -bound, bound).astype(self.param_dtype)
            self.pb = jax.random.uniform(k4, (1, out_features),
                                         jnp.float32, -bound, bound).astype(self.param_dtype)
            self.pw_pad = self._pad_w(self.pw)
            self.pb_pad = self._pad_b(self.pb)
        else:
            self.pw = self.pb = self.pw_pad = self.pb_pad = None
        # TODO(synk): for v7x, optionally quantize streamed weights to fp8 with
        # per-tensor scales folded into the finalize branch (halves weight HBM
        # bytes again on top of bf16) if the DQN tolerates it.

    def _pad_w(self, w):
        K, N = w.shape
        if (self._Kp, self._Np) == (K, N):
            return w
        return jnp.pad(w, ((0, self._Kp - K), (0, self._Np - N)))

    def _pad_b(self, b):
        if self._Np == b.shape[1]:
            return b
        return jnp.pad(b, ((0, 0), (0, self._Np - b.shape[1])))

    def _use_small_path(self, m, has_prior):
        streams = 2 if has_prior else 1
        itemsize = self.param_dtype.itemsize
        footprint = (streams * (m * self.in_features
                                + self.in_features * self.out_features
                                + self.out_features) * itemsize
                     + m * self.out_features * 4)
        return footprint <= self.small_path_bytes

    def __call__(self, x, prior_x=None):
        use_prior = (prior_x is not None) and (self.prior_std > 0)
        out_dtype = x.dtype
        xc = x if x.dtype == self.param_dtype else x.astype(self.param_dtype)
        m = x.shape[0]

        if not use_prior:
            if self._use_small_path(m, False):
                return pallas_linear_small(xc, self.w, self.b, out_dtype=out_dtype)
            out = pallas_linear_tiled(
                xc, self.w_pad, self.b_pad, out_dtype=out_dtype,
                tm_max=self.tm_max, tn_max=self.tn_max, tk_max=self.tk_max)
            return out[:, :self.out_features] if out.shape[1] != self.out_features else out

        pxc = prior_x if prior_x.dtype == self.param_dtype else prior_x.astype(self.param_dtype)
        if self._use_small_path(m, True):
            return pallas_linear_small(
                xc, self.w, self.b, x_prior=pxc, w_prior=self.pw, b_prior=self.pb,
                s_post=self.posterior_scale, s_prior=self.prior_scale,
                out_dtype=out_dtype)
        out = pallas_linear_tiled(
            xc, self.w_pad, self.b_pad, x_prior=pxc, w_prior=self.pw_pad,
            b_prior=self.pb_pad, s_post=self.posterior_scale,
            s_prior=self.prior_scale, out_dtype=out_dtype,
            tm_max=self.tm_max, tn_max=self.tn_max, tk_max=self.tk_max)
        return out[:, :self.out_features] if out.shape[1] != self.out_features else out


# ------------------------------ main -----------------------------------------


if __name__ == "__main__":
    key = jax.random.PRNGKey(0)
    (k_param, k_param2, k_x, k_px,
     k_xt, k_wt, k_bt, k_pxt, k_pwt, k_pbt) = jax.random.split(key, 10)

    # --- DQN-sized module (exercises the no-grid small fast path), f32 ------
    batch, in_features, out_features = 8, 32, 64
    module = LinearPallas(in_features, out_features, k_param,
                          prior_std=1.0, prior_scale=0.5, posterior_scale=2.0)

    x = jax.random.normal(k_x, (batch, in_features), jnp.float32)
    prior_x = jax.random.normal(k_px, (batch, in_features), jnp.float32)

    out_base = module(x)                       # base-only path (prior_x=None)
    jax.block_until_ready(out_base)
    out_full = module(x, prior_x)              # base + scaled prior path
    jax.block_until_ready(out_full)

    ref_base = x @ module.w + module.b
    ref_full = (ref_base * module.posterior_scale
                + (prior_x @ module.pw + module.pb) * module.prior_scale)
    assert out_base.shape == (batch, out_features)
    assert out_full.shape == (batch, out_features)
    assert jnp.allclose(out_base, ref_base, atol=1e-4, rtol=1e-4), \
        float(jnp.max(jnp.abs(out_base - ref_base)))
    assert jnp.allclose(out_full, ref_full, atol=1e-4, rtol=1e-4), \
        float(jnp.max(jnp.abs(out_full - ref_full)))

    # --- tiled 3-D grid path (forced small tiles, ragged shapes -> pad/slice)
    Mt, Kt, Nt = 10, 300, 200
    xt = jax.random.normal(k_xt, (Mt, Kt), jnp.float32)
    wt = jax.random.normal(k_wt, (Kt, Nt), jnp.float32) * 0.05
    bt = jax.random.normal(k_bt, (1, Nt), jnp.float32)
    pxt = jax.random.normal(k_pxt, (Mt, Kt), jnp.float32)
    pwt = jax.random.normal(k_pwt, (Kt, Nt), jnp.float32) * 0.05
    pbt = jax.random.normal(k_pbt, (1, Nt), jnp.float32)

    out_t = pallas_linear_tiled(xt, wt, bt, tm_max=8, tn_max=128, tk_max=128)
    jax.block_until_ready(out_t)
    ref_t = xt @ wt + bt
    assert jnp.allclose(out_t, ref_t, atol=1e-3, rtol=1e-4), \
        float(jnp.max(jnp.abs(out_t - ref_t)))

    out_tp = pallas_linear_tiled(xt, wt, bt, x_prior=pxt, w_prior=pwt,
                                 b_prior=pbt, s_post=2.0, s_prior=0.5,
                                 tm_max=8, tn_max=128, tk_max=128)
    jax.block_until_ready(out_tp)
    ref_tp = 2.0 * (xt @ wt + bt) + 0.5 * (pxt @ pwt + pbt)
    assert jnp.allclose(out_tp, ref_tp, atol=1e-3, rtol=1e-4), \
        float(jnp.max(jnp.abs(out_tp - ref_tp)))

    # --- bf16 weight/activation streaming (v6e/v7x MXU-native), f32 accum ---
    module_bf16 = LinearPallas(in_features, out_features, k_param2,
                               prior_std=1.0, prior_scale=0.5,
                               posterior_scale=2.0, param_dtype=jnp.bfloat16)
    out_bf = module_bf16(x, prior_x)
    jax.block_until_ready(out_bf)
    xb = x.astype(jnp.bfloat16).astype(jnp.float32)
    pxb = prior_x.astype(jnp.bfloat16).astype(jnp.float32)
    ref_bf = (2.0 * (xb @ module_bf16.w.astype(jnp.float32)
                     + module_bf16.b.astype(jnp.float32))
              + 0.5 * (pxb @ module_bf16.pw.astype(jnp.float32)
                       + module_bf16.pb.astype(jnp.float32)))
    assert jnp.allclose(out_bf, ref_bf, atol=5e-2, rtol=5e-2), \
        float(jnp.max(jnp.abs(out_bf - ref_bf)))

    print("KERNEL_OK")
</pallas_src>

<mosaic_0001>
module attributes {stable_mosaic.version = 11 : i64} {
  func.func @_small_linear_kernel(%arg0: memref<8x32xf32, #tpu.memory_space<vmem>>, %arg1: memref<32x64xf32, #tpu.memory_space<vmem>>, %arg2: memref<1x64xf32, #tpu.memory_space<vmem>>, %arg3: memref<8x64xf32, #tpu.memory_space<vmem>>) attributes {dimension_semantics = [], scalar_prefetch = 0 : i64, scratch_operands = 0 : i64, tpu.core_type = #tpu.core_type<tc>} {
    %c0 = arith.constant 0 : index
    %c0_0 = arith.constant 0 : index
    %0 = vector.load %arg0[%c0, %c0_0] : memref<8x32xf32, #tpu.memory_space<vmem>>, vector<8x32xf32>
    %c0_1 = arith.constant 0 : index
    %c0_2 = arith.constant 0 : index
    %1 = vector.load %arg1[%c0_1, %c0_2] : memref<32x64xf32, #tpu.memory_space<vmem>>, vector<32x64xf32>
    %cst = arith.constant dense<0.000000e+00> : vector<8x64xf32>
    %2 = tpu.matmul %0, %1, %cst {dimension_numbers = #tpu.dot_dimension_numbers<[1], [0], [0], [1], [0, 0, 1, 1], [], []>} : vector<8x32xf32>, vector<32x64xf32>, vector<8x64xf32> -> vector<8x64xf32>
    %c0_3 = arith.constant 0 : index
    %c0_4 = arith.constant 0 : index
    %3 = vector.load %arg2[%c0_3, %c0_4] : memref<1x64xf32, #tpu.memory_space<vmem>>, vector<1x64xf32>
    %4 = vector.broadcast %3 : vector<1x64xf32> to vector<8x64xf32>
    %5 = arith.addf %2, %4 : vector<8x64xf32>
    %c0_5 = arith.constant 0 : index
    %c0_6 = arith.constant 0 : index
    %6 = vector.load %arg3[%c0_5, %c0_6] : memref<8x64xf32, #tpu.memory_space<vmem>>, vector<8x64xf32>
    tpu.vector_store %arg3[%c0_5, %c0_6], %5 {strides = array<i32>} : memref<8x64xf32, #tpu.memory_space<vmem>>, vector<8x64xf32>,
    return
  }
}

</mosaic_0001>

<llo_original>
// kernel: tpu_custom_call.1
$region0: #{tpu_custom_call.1}
  #allocation0 [shape = 'u32[]', space=smem, size = 0x4, offset = 0x4, fixed_abs, tag = 'smem constant byte address 0x4 - core index']
  #allocation1 [shape = 'u32[144,128]{1,0:T(1,128)}', space=vmem, size = 0x12000, scoped, tag = 'internal scratch']
  %s0 = inlined_call_operand.hbm [shape: f32[8,32], index: 0, kind: input, shape index: {}]
  %s1 = inlined_call_operand.hbm [shape: f32[32,64], index: 1, kind: input, shape index: {}]
  %s2 = inlined_call_operand.vmem [shape: f32[1,64], index: 2, kind: input, shape index: {}]
  %s3 = inlined_call_operand.hbm [shape: f32[8,64], index: 3, kind: output, shape index: {}]
  %s4 = sld [smem:[#allocation0]]
  $region30: #{tpu_custom_call.1} parent=0
    _
  %s6 = ssub.s32 1, %s4
  %s7 = scalar_select 0, %s6, %s4
  $region1: #{tpu_custom_call.1} parent=0
    #allocation2 [shape = 'u8[4096]{0}', space=vmem, size = 0x1000, scoped, tag = 'input window, operand 0, single buffered']
    #allocation3 [shape = 's32[1]{0}', space=sflag, size = 0x4, scoped, tag = 'scoped memory for tpu_custom_call.1']
    #allocation4 [shape = 's32[1]{0}', space=sflag, size = 0x4, scoped, tag = 'scoped memory for tpu_custom_call.1']
    #allocation5 [shape = 'u8[16384]{0}', space=vmem, size = 0x4000, scoped, tag = 'input window, operand 1, single buffered']
    #allocation6 [shape = 's32[1]{0}', space=sflag, size = 0x4, scoped, tag = 'scoped memory for tpu_custom_call.1']
    #allocation7 [shape = 'u8[4096]{0}', space=vmem, size = 0x1000, scoped, tag = 'output window, operand 0, single buffered']
    %8 = vsyncpa [#allocation3], 0
    %9 = vsyncpa [#allocation6], 0
    %10 = vsyncpa [#allocation4], 0
    // Predicated region
    $region2: #{tpu_custom_call.1} parent=1 // pred_check
      _
    $region3: #{tpu_custom_call.1} parent=1 // pred_check_branch
      %12 = sbr.rel (0) target = $region5
    $region4: #{tpu_custom_call.1} parent=1 // pred_region
      %s14 = ssub.s32 128, 128
      %15 = vsyncadd [#allocation3], %s14
      %s17 = sshll.u32 [#allocation2], 4
      %s18 = int_to_ptr.vmem [resolvable:$true] %s17
      %20 = dma.hbm_to_vmem [thread:$0]  %s0, 128, %s18, [#allocation3]
    $region5: #{tpu_custom_call.1} parent=1 // pred_fallthru
      _
    // Predicated region
    $region6: #{tpu_custom_call.1} parent=1 // pred_check
      _
    $region7: #{tpu_custom_call.1} parent=1 // pred_check_branch
      %22 = sbr.rel (0) target = $region9
    $region8: #{tpu_custom_call.1} parent=1 // pred_region
      %s24 = ssub.s32 512, 512
      %25 = vsyncadd [#allocation6], %s24
      %s26 = sshll.u32 [#allocation5], 4
      %s27 = int_to_ptr.vmem [resolvable:$true] %s26
      %32 = dma.hbm_to_vmem [thread:$0]  %s1, 512, %s27, [#allocation6], 128, 128, 8
    $region9: #{tpu_custom_call.1} parent=1 // pred_fallthru
      _
    // Predicated region
    $region10: #{tpu_custom_call.1} parent=1 // pred_check
      _
    $region11: #{tpu_custom_call.1} parent=1 // pred_check_branch
      %34 = sbr.rel (0) target = $region13
    $region12: #{tpu_custom_call.1} parent=1 // pred_region
      _
    $region13: #{tpu_custom_call.1} parent=1 // pred_fallthru
      _
    // Predicated region
    $region14: #{tpu_custom_call.1} parent=1 // pred_check
      _
    $region15: #{tpu_custom_call.1} parent=1 // pred_check_branch
      %36 = sbr.rel (0) target = $region17
    $region16: #{tpu_custom_call.1} parent=1 // pred_region
      %37 = dma.done [#allocation3], 128
    $region17: #{tpu_custom_call.1} parent=1 // pred_fallthru
      _
    // Predicated region
    $region18: #{tpu_custom_call.1} parent=1 // pred_check
      _
    $region19: #{tpu_custom_call.1} parent=1 // pred_check_branch
      %39 = sbr.rel (0) target = $region21
    $region20: #{tpu_custom_call.1} parent=1 // pred_region
      %40 = dma.done [#allocation6], 512
    $region21: #{tpu_custom_call.1} parent=1 // pred_fallthru
      _
    %v41 = vld [vmem:[#allocation2] sm:$0xff]
    %v42 = vld [vmem:[#allocation5] sm:$0xff]
    %v43 = vld [vmem:[#allocation5 + $0x8] sm:$0xff]
    %v44 = vld [vmem:[#allocation5 + $0x10] sm:$0xff]
    %v45 = vld [vmem:[#allocation5 + $0x18] sm:$0xff]
    %v46 = vld [vmem:[%s2] sm:$0x1]
    %v48 = vlaneseq
    %v49 = vshrl.u32 %v48, 7
    %v50 = vsub.s32 0, %v49
    %v51 = vrot.slane %v46, %v50
    %vm53 = vcmask 261120
    %v55 = vsel %vm53, %v41, 0
    %57 = vmatprep.subr.mxu0 0.0
    %58 = vmatpush1.msra.mxu0 %v42
    %59 = vmatprep.subr.mxu0 0.0
    %60 = vmatpush1.msra.mxu0 %v43
    %61 = vmatprep.subr.mxu0 0.0
    %62 = vmatpush1.msra.mxu0 %v44
    %63 = vmatprep.subr.mxu0 0.0
    %64 = vmatpush1.msra.mxu0 %v45
    %65 = vmatprep.subr.mxu0 0.0
    %66 = vmatpush1.msra.mxu0 0.0
    %67 = vmatprep.subr.mxu0 0.0
    %68 = vmatpush1.msra.mxu0 0.0
    %69 = vmatprep.subr.mxu0 0.0
    %70 = vmatpush1.msra.mxu0 0.0
    %71 = vmatprep.subr.mxu0 0.0
    %72 = vmatpush1.msra.mxu0 0.0
    %73 = vmatprep.subr.mxu0 0.0
    %74 = vmatpush1.msra.mxu0 0.0
    %75 = vmatprep.subr.mxu0 0.0
    %76 = vmatpush1.msra.mxu0 0.0
    %77 = vmatprep.subr.mxu0 0.0
    %78 = vmatpush1.msra.mxu0 0.0
    %79 = vmatprep.subr.mxu0 0.0
    %80 = vmatpush1.msra.mxu0 0.0
    %81 = vmatprep.subr.mxu0 0.0
    %82 = vmatpush1.msra.mxu0 0.0
    %83 = vmatprep.subr.mxu0 0.0
    %84 = vmatpush1.msra.mxu0 0.0
    %85 = vmatprep.subr.mxu0 0.0
    %86 = vmatpush1.msra.mxu0 0.0
    %87 = vmatprep.subr.mxu0 0.0
    %88 = vmatpush1.msra.mxu0 0.0
    %89 = vmatprep.subr.mxu0 0.0
    %90 = vmatpush1.msra.mxu0 0.0
    %91 = vmatprep.subr.mxu0 0.0
    %92 = vmatpush1.msra.mxu0 0.0
    %93 = vmatprep.subr.mxu0 0.0
    %94 = vmatpush1.msra.mxu0 0.0
    %95 = vmatprep.subr.mxu0 0.0
    %96 = vmatpush1.msra.mxu0 0.0
    %97 = vmatprep.subr.mxu0 0.0
    %98 = vmatpush1.msra.mxu0 0.0
    %99 = vmatprep.subr.mxu0 0.0
    %100 = vmatpush1.msra.mxu0 0.0
    %101 = vmatprep.subr.mxu0 0.0
    %102 = vmatpush1.msra.mxu0 0.0
    %103 = vmatprep.subr.mxu0 0.0
    %104 = vmatpush1.msra.mxu0 0.0
    %105 = vmatprep.subr.mxu0 0.0
    %106 = vmatpush1.msra.mxu0 0.0
    %107 = vmatprep.subr.mxu0 0.0
    %108 = vmatpush1.msra.mxu0 0.0
    %109 = vmatprep.subr.mxu0 0.0
    %110 = vmatpush1.msra.mxu0 0.0
    %111 = vmatprep.subr.mxu0 0.0
    %112 = vmatpush1.msra.mxu0 0.0
    %113 = vmatprep.subr.mxu0 0.0
    %114 = vmatpush1.msra.mxu0 0.0
    %115 = vmatprep.subr.mxu0 0.0
    %116 = vmatpush1.msra.mxu0 0.0
    %117 = vmatprep.subr.mxu0 0.0
    %118 = vmatpush1.msra.mxu0 0.0
    %119 = vmatprep.subr.mxu0 0.0
    %120 = vmatpush1.msra.mxu0 0.0
    %121 = vmatprep.mubr.f32.mxu0 0.0
    %122 = vmatmul.mubr.f32.gmra.mrb[0].mxu0 %v55
    %v123 = vpop.f32.mrb[0].mxu0
    %v124 = vadd.f32 %v51, %v123
    %v125 = vpop.f32.mrb[0].mxu0
    %126 = vdwg.mxu0
    %vm127 = vcmask 523264
    %128 = vst.msk [vmem:[#allocation7] sm:$0xff] %vm127, %v124
    // Predicated region
    $region22: #{tpu_custom_call.1} parent=1 // pred_check
      _
    $region23: #{tpu_custom_call.1} parent=1 // pred_check_branch
      %130 = sbr.rel (0) target = $region25
    $region24: #{tpu_custom_call.1} parent=1 // pred_region
      %s132 = ssub.s32 128, 128
      %133 = vsyncadd [#allocation4], %s132
      %s135 = sshll.u32 [#allocation7], 4
      %s136 = int_to_ptr.vmem [resolvable:$true] %s135
      %138 = dma.vmem_to_hbm [thread:$0]  %s136, 128, %s3, [#allocation4]
    $region25: #{tpu_custom_call.1} parent=1 // pred_fallthru
      _
    // Predicated region
    $region26: #{tpu_custom_call.1} parent=1 // pred_check
      _
    $region27: #{tpu_custom_call.1} parent=1 // pred_check_branch
      %140 = sbr.rel (0) target = $region29
    $region28: #{tpu_custom_call.1} parent=1 // pred_region
      %141 = dma.done [#allocation4], 128
    $region29: #{tpu_custom_call.1} parent=1 // pred_fallthru
      _
    %142 = vsyncpa [#allocation3], 1
    %143 = vsyncpa [#allocation6], 1
    %144 = vsyncpa [#allocation4], 1

</llo_original>
